<compile_context>
chip_gen: v7x
topology: tpu7x:2x2x1
jax: 0.10.0
libtpu: 0.0.40
codegen_flags: <defaults>
</compile_context>

<pallas_src>
import jax
import jax.numpy as jnp
from jax.experimental import pallas as pl
from jax.experimental.pallas import tpu as pltpu


def _tpu_config():
    """Per-generation (num_partials, target_block_bytes, vmem_limit_bytes)."""
    # Conservative defaults (unknown / megacore parts).
    num_partials, block_bytes, vmem_limit = 2, 4 << 20, 64 << 20
    try:
        kind = jax.devices()[0].device_kind.lower()
    except Exception:  # pragma: no cover
        kind = ""
    if ("v7" in kind) or ("7x" in kind):
        # 2 TensorCores per chip, but only 64 MiB VMEM per core.
        num_partials, block_bytes, vmem_limit = 2, 3 << 20, 40 << 20
    elif any(k in kind for k in ("v5 lite", "v5e", "v6 lite", "v6e")):
        # Single TensorCore, 128 MiB VMEM, HBM-bound: big blocks amortize the
        # ~0.35us per-grid-step overhead; a second partial would only add a
        # redundant init/finalize pass on 1-TC chips.
        num_partials, block_bytes, vmem_limit = 1, 8 << 20, 96 << 20
    try:
        # Clamp against the actual VMEM capacity (double-buffered input plus
        # f32 temporaries must fit comfortably).
        vmem_cap = pltpu.get_tpu_info().vmem_capacity_bytes
        block_bytes = min(block_bytes, max(1 << 20, vmem_cap // 12))
        vmem_limit = min(vmem_limit, (vmem_cap * 3) // 4)
    except Exception:  # pragma: no cover
        pass
    return num_partials, block_bytes, vmem_limit


def _make_tv_kernel(h, w, tile_bc, n_inner, bc, scale, inv_ch, inv_cw,
                    use_roll, needs_row_mask):
    """Kernel over blocks of flattened (H*W) image rows.

    Grid = (num_partials, n_inner). The inner axis accumulates per-lane |dh| /
    |dw| partial sums into full-width (8, H*W) f32 VMEM scratch; the last inner
    step applies the lane masks, reduces, scales and writes this partial's
    output block.
    """
    hw = h * w
    groups = tile_bc // 8

    def tv_kernel(x_ref, o_ref, acc_h_ref, acc_w_ref):
        i = pl.program_id(1)

        @pl.when(i == 0)
        def _init():
            acc_h_ref[...] = jnp.zeros_like(acc_h_ref)
            acc_w_ref[...] = jnp.zeros_like(acc_w_ref)

        x = x_ref[...]  # (tile_bc, hw) in the input dtype

        if needs_row_mask:
            # Rows past the real B*C extent hold unspecified data (no host-side
            # pad anymore) -> zero them. Row diffs are per-image, so zero rows
            # contribute exactly 0 to both TV terms.
            block_start = (pl.program_id(0) * n_inner + i) * tile_bc
            rows = jax.lax.broadcasted_iota(jnp.int32, (tile_bc, 1), 0)
            x = jnp.where(block_start + rows < bc, x, 0)

        # Skip the cast entirely for f32 inputs; otherwise widen once and reuse
        # for both diffs (no per-diff duplicate full-tile converts).
        xf = x if x.dtype == jnp.float32 else x.astype(jnp.float32)

        if use_roll:
            # Full-width circular shifts on the XLU; the wrap-around lanes
            # (j >= hw-w for dh, j % w == w-1 for dw) are masked in _finalize.
            dh = pltpu.roll(xf, shift=hw - w, axis=1) - xf   # x[j+w] - x[j]
            dw = pltpu.roll(xf, shift=hw - 1, axis=1) - xf   # x[j+1] - x[j]
            ah = jnp.abs(dh).reshape(groups, 8, hw).sum(axis=0)
            aw = jnp.abs(dw).reshape(groups, 8, hw).sum(axis=0)
            acc_h_ref[...] += ah
            acc_w_ref[...] += aw
        else:
            # Fallback for H*W not a multiple of 128 (roll path needs aligned
            # lane widths). Tails of the scratch buffers stay zero.
            dh = xf[:, w:] - xf[:, : hw - w]
            dw = xf[:, 1:] - xf[:, : hw - 1]
            ah = jnp.abs(dh).reshape(groups, 8, hw - w).sum(axis=0)
            aw = jnp.abs(dw).reshape(groups, 8, hw - 1).sum(axis=0)
            acc_h_ref[:, : hw - w] += ah
            acc_w_ref[:, : hw - 1] += aw

        @pl.when(i == pl.num_programs(1) - 1)
        def _finalize():
            col = jax.lax.broadcasted_iota(jnp.int32, (1, hw), 1)
            h_mask = col < (hw - w)            # drop dh lanes that wrap images
            w_mask = (col % w) != (w - 1)      # drop dw lanes that wrap rows
            h_tv = jnp.sum(jnp.where(h_mask, acc_h_ref[...], 0.0))
            w_tv = jnp.sum(jnp.where(w_mask, acc_w_ref[...], 0.0))
            loss = scale * (h_tv * inv_ch + w_tv * inv_cw)
            o_ref[...] = jnp.full((1, 128), loss, dtype=jnp.float32)

    return tv_kernel


def tv_loss(x, *, num_partials=None, target_block_bytes=None,
            vmem_limit_bytes=None):
    """x: (B, C, H, W). Returns scalar TV loss (float32), matching
    2 * (sum|dh| / ((h-1)*w) + sum|dw| / (h*(w-1))) / b."""
    b, c, h, w = x.shape
    assert h >= 2 and w >= 2, "TV loss needs h >= 2 and w >= 2"

    cfg_np, cfg_blk, cfg_vmem = _tpu_config()
    if num_partials is None:
        num_partials = cfg_np
    if target_block_bytes is None:
        target_block_bytes = cfg_blk
    if vmem_limit_bytes is None:
        vmem_limit_bytes = cfg_vmem

    bc = b * c
    hw = h * w
    count_h = (h - 1) * w
    count_w = h * (w - 1)
    scale = 2.0 / float(b)
    inv_ch = 1.0 / float(count_h)
    inv_cw = 1.0 / float(count_w)

    # Lane-dense layout: each (H, W) image becomes one row of length H*W.
    # (Pure reshape: no HBM copy, unlike the old jnp.pad path.)
    x_flat = x.reshape(bc, hw)

    itemsize = jnp.dtype(x.dtype).itemsize
    slices_per_block = max(1, target_block_bytes // max(1, hw * itemsize))
    tile_bc = max(8, (min(bc, slices_per_block) // 8) * 8)
    # TODO(synk): add lane-dim (H*W) tiling for very large images where even an
    # 8-row block plus f32 temporaries would not fit the VMEM budget.

    n_blocks_real = pl.cdiv(bc, tile_bc)
    num_partials = max(1, min(num_partials, n_blocks_real))
    n_inner = pl.cdiv(n_blocks_real, num_partials)
    max_block = n_blocks_real - 1
    # Any row beyond bc (partial last block, or grid padded to num_partials)
    # must be masked in-kernel; fully out-of-range block indices are clamped.
    needs_row_mask = (num_partials * n_inner * tile_bc) != bc
    use_roll = (hw % 128 == 0)

    kernel = _make_tv_kernel(h, w, tile_bc, n_inner, bc, scale, inv_ch, inv_cw,
                             use_roll, needs_row_mask)

    cost = pl.CostEstimate(flops=4 * bc * hw, transcendentals=0,
                           bytes_accessed=bc * hw * itemsize)

    out = pl.pallas_call(
        kernel,
        out_shape=jax.ShapeDtypeStruct((num_partials, 1, 128), jnp.float32),
        grid_spec=pltpu.PrefetchScalarGridSpec(
            num_scalar_prefetch=0,
            grid=(num_partials, n_inner),
            in_specs=[
                pl.BlockSpec(
                    (tile_bc, hw),
                    lambda p, i: (jnp.minimum(p * n_inner + i, max_block), 0)),
            ],
            out_specs=pl.BlockSpec((None, 1, 128), lambda p, i: (p, 0, 0)),
            scratch_shapes=[
                pltpu.VMEM((8, hw), jnp.float32),  # height-TV per-lane sums
                pltpu.VMEM((8, hw), jnp.float32),  # width-TV per-lane sums
            ],
        ),
        compiler_params=pltpu.CompilerParams(
            dimension_semantics=("parallel", "arbitrary"),
            vmem_limit_bytes=vmem_limit_bytes,
        ),
        cost_estimate=cost,
    )(x_flat)

    # One scaled partial per TensorCore partition; sum for the final scalar.
    return jnp.sum(out[:, 0, 0])


def tv_loss_ref(x):
    """Pure-JAX reference reproducing the PyTorch forward exactly."""
    b, c, h, w = x.shape
    count_h = (h - 1) * w
    count_w = h * (w - 1)
    h_tv = jnp.sum(jnp.abs(x[:, :, 1:, :] - x[:, :, : h - 1, :]))
    w_tv = jnp.sum(jnp.abs(x[:, :, :, 1:] - x[:, :, :, : w - 1]))
    return 2.0 * (h_tv / count_h + w_tv / count_w) / b


if __name__ == "__main__":
    key = jax.random.PRNGKey(0)
    x = jax.random.normal(key, (2, 4, 16, 16), dtype=jnp.float32)

    loss = jax.block_until_ready(tv_loss(x))
    ref = tv_loss_ref(x)
    assert jnp.allclose(loss, ref, rtol=1e-5, atol=1e-5), (loss, ref)

    # Ragged B*C (9 rows, not a multiple of 8) and unaligned H*W (391) exercise
    # the in-kernel row mask, index clamping and the slice fallback path.
    x2 = jax.random.normal(jax.random.PRNGKey(1), (3, 3, 17, 23),
                           dtype=jnp.float32)
    loss2 = jax.block_until_ready(tv_loss(x2))
    ref2 = tv_loss_ref(x2)
    assert jnp.allclose(loss2, ref2, rtol=1e-4, atol=1e-4), (loss2, ref2)

    print("KERNEL_OK")
</pallas_src>

<mosaic_0001>
module attributes {stable_mosaic.version = 11 : i64} {
  func.func @tv_kernel(%arg0: i32, %arg1: i32, %arg2: memref<8x256xf32, #tpu.memory_space<vmem>>, %arg3: memref<1x1x128xf32, #tpu.memory_space<vmem>>, %arg4: memref<8x256xf32, #tpu.memory_space<vmem>>, %arg5: memref<8x256xf32, #tpu.memory_space<vmem>>) attributes {dimension_semantics = [#tpu.dimension_semantics<parallel>, #tpu.dimension_semantics<arbitrary>], iteration_bounds = array<i64: 1, 1>, scalar_prefetch = 0 : i64, scratch_operands = 2 : i64, tpu.core_type = #tpu.core_type<tc>, window_params = [{transform_indices = @transform_0, window_bounds = array<i64: 8, 256>}, {transform_indices = @transform_1, window_bounds = array<i64: 1, 1, 128>}]} {
    %c0_i32 = arith.constant 0 : i32
    %0 = arith.cmpi eq, %arg1, %c0_i32 : i32
    %1 = arith.extui %0 : i1 to i32
    %c0_i32_0 = arith.constant 0 : i32
    %2 = arith.cmpi ne, %1, %c0_i32_0 : i32
    scf.if %2 {
      %cst_13 = arith.constant 0.000000e+00 : f32
      %23 = vector.broadcast %cst_13 : f32 to vector<8x256xf32>
      %c0_14 = arith.constant 0 : index
      %c0_15 = arith.constant 0 : index
      %24 = vector.load %arg4[%c0_14, %c0_15] : memref<8x256xf32, #tpu.memory_space<vmem>>, vector<8x256xf32>
      tpu.vector_store %arg4[%c0_14, %c0_15], %23 {strides = array<i32>} : memref<8x256xf32, #tpu.memory_space<vmem>>, vector<8x256xf32>,
      %cst_16 = arith.constant 0.000000e+00 : f32
      %25 = vector.broadcast %cst_16 : f32 to vector<8x256xf32>
      %c0_17 = arith.constant 0 : index
      %c0_18 = arith.constant 0 : index
      %26 = vector.load %arg5[%c0_17, %c0_18] : memref<8x256xf32, #tpu.memory_space<vmem>>, vector<8x256xf32>
      tpu.vector_store %arg5[%c0_17, %c0_18], %25 {strides = array<i32>} : memref<8x256xf32, #tpu.memory_space<vmem>>, vector<8x256xf32>,
    } else {
    }
    %c0 = arith.constant 0 : index
    %c0_1 = arith.constant 0 : index
    %3 = vector.load %arg2[%c0, %c0_1] : memref<8x256xf32, #tpu.memory_space<vmem>>, vector<8x256xf32>
    %c240_i32 = arith.constant 240 : i32
    %4 = tpu.dynamic_rotate %3 by %c240_i32 dim 1 : vector<8x256xf32>, i32 -> vector<8x256xf32>
    %5 = arith.subf %4, %3 : vector<8x256xf32>
    %c255_i32 = arith.constant 255 : i32
    %6 = tpu.dynamic_rotate %3 by %c255_i32 dim 1 : vector<8x256xf32>, i32 -> vector<8x256xf32>
    %7 = arith.subf %6, %3 : vector<8x256xf32>
    %8 = math.absf %5 : vector<8x256xf32>
    %9 = vector.shape_cast %8 : vector<8x256xf32> to vector<1x8x256xf32>
    %cst = arith.constant dense<0.000000e+00> : vector<8x256xf32>
    %10 = vector.multi_reduction <add>, %9, %cst [0] : vector<1x8x256xf32> to vector<8x256xf32>
    %11 = math.absf %7 : vector<8x256xf32>
    %12 = vector.shape_cast %11 : vector<8x256xf32> to vector<1x8x256xf32>
    %cst_2 = arith.constant dense<0.000000e+00> : vector<8x256xf32>
    %13 = vector.multi_reduction <add>, %12, %cst_2 [0] : vector<1x8x256xf32> to vector<8x256xf32>
    %c0_3 = arith.constant 0 : index
    %c0_4 = arith.constant 0 : index
    %14 = vector.load %arg4[%c0_3, %c0_4] : memref<8x256xf32, #tpu.memory_space<vmem>>, vector<8x256xf32>
    %15 = arith.addf %14, %10 : vector<8x256xf32>
    %c0_5 = arith.constant 0 : index
    %c0_6 = arith.constant 0 : index
    %16 = vector.load %arg4[%c0_5, %c0_6] : memref<8x256xf32, #tpu.memory_space<vmem>>, vector<8x256xf32>
    tpu.vector_store %arg4[%c0_5, %c0_6], %15 {strides = array<i32>} : memref<8x256xf32, #tpu.memory_space<vmem>>, vector<8x256xf32>,
    %c0_7 = arith.constant 0 : index
    %c0_8 = arith.constant 0 : index
    %17 = vector.load %arg5[%c0_7, %c0_8] : memref<8x256xf32, #tpu.memory_space<vmem>>, vector<8x256xf32>
    %18 = arith.addf %17, %13 : vector<8x256xf32>
    %c0_9 = arith.constant 0 : index
    %c0_10 = arith.constant 0 : index
    %19 = vector.load %arg5[%c0_9, %c0_10] : memref<8x256xf32, #tpu.memory_space<vmem>>, vector<8x256xf32>
    tpu.vector_store %arg5[%c0_9, %c0_10], %18 {strides = array<i32>} : memref<8x256xf32, #tpu.memory_space<vmem>>, vector<8x256xf32>,
    %c0_i32_11 = arith.constant 0 : i32
    %20 = arith.cmpi eq, %arg1, %c0_i32_11 : i32
    %21 = arith.extui %20 : i1 to i32
    %c0_i32_12 = arith.constant 0 : i32
    %22 = arith.cmpi ne, %21, %c0_i32_12 : i32
    scf.if %22 {
      %23 = tpu.iota {dimensions = array<i32: 1>} : vector<1x256xi32>
      %c240_i32_13 = arith.constant 240 : i32
      %24 = vector.broadcast %c240_i32_13 : i32 to vector<1x256xi32>
      %25 = arith.cmpi slt, %23, %24 : vector<1x256xi32>
      %c16_i32 = arith.constant 16 : i32
      %c0_i32_14 = arith.constant 0 : i32
      %26 = arith.cmpi eq, %c16_i32, %c0_i32_14 : i32
      %c1_i32 = arith.constant 1 : i32
      %27 = arith.select %26, %c1_i32, %c16_i32 : i32
      %28 = vector.broadcast %27 : i32 to vector<1x256xi32>
      %29 = arith.remsi %23, %28 : vector<1x256xi32>
      %c0_i32_15 = arith.constant 0 : i32
      %30 = vector.broadcast %c0_i32_15 : i32 to vector<1x256xi32>
      %31 = arith.cmpi ne, %29, %30 : vector<1x256xi32>
      %c0_i32_16 = arith.constant 0 : i32
      %32 = vector.broadcast %c0_i32_16 : i32 to vector<1x256xi32>
      %33 = arith.cmpi slt, %29, %32 : vector<1x256xi32>
      %c0_i32_17 = arith.constant 0 : i32
      %34 = arith.cmpi slt, %27, %c0_i32_17 : i32
      %35 = vector.broadcast %34 : i1 to vector<1x256xi1>
      %36 = vector.broadcast %35 : vector<1x256xi1> to vector<1x256xi1>
      %37 = arith.xori %33, %36 : vector<1x256xi1>
      %38 = arith.andi %37, %31 : vector<1x256xi1>
      %39 = vector.broadcast %27 : i32 to vector<1x256xi32>
      %40 = arith.addi %29, %39 : vector<1x256xi32>
      %41 = arith.select %38, %40, %29 : vector<1x256xi1>, vector<1x256xi32>
      %c15_i32 = arith.constant 15 : i32
      %42 = vector.broadcast %c15_i32 : i32 to vector<1x256xi32>
      %43 = arith.cmpi ne, %41, %42 : vector<1x256xi32>
      %c0_18 = arith.constant 0 : index
      %c0_19 = arith.constant 0 : index
      %44 = vector.load %arg4[%c0_18, %c0_19] : memref<8x256xf32, #tpu.memory_space<vmem>>, vector<8x256xf32>
      %cst_20 = arith.constant 0.000000e+00 : f32
      %45 = vector.shape_cast %25 : vector<1x256xi1> to vector<1x256xi1>
      %46 = vector.broadcast %45 : vector<1x256xi1> to vector<8x256xi1>
      %47 = vector.broadcast %cst_20 : f32 to vector<8x256xf32>
      %48 = arith.select %46, %44, %47 : vector<8x256xi1>, vector<8x256xf32>
      %49 = vector.shape_cast %48 : vector<8x256xf32> to vector<1x8x256xf32>
      %cst_21 = arith.constant dense<0.000000e+00> : vector<1xf32>
      %50 = vector.multi_reduction <add>, %49, %cst_21 [1, 2] : vector<1x8x256xf32> to vector<1xf32>
      %51 = vector.shape_cast %50 : vector<1xf32> to vector<1x1x1xf32>
      %52 = vector.extract %51[0, 0, 0] : f32 from vector<1x1x1xf32>
      %c0_22 = arith.constant 0 : index
      %c0_23 = arith.constant 0 : index
      %53 = vector.load %arg5[%c0_22, %c0_23] : memref<8x256xf32, #tpu.memory_space<vmem>>, vector<8x256xf32>
      %cst_24 = arith.constant 0.000000e+00 : f32
      %54 = vector.shape_cast %43 : vector<1x256xi1> to vector<1x256xi1>
      %55 = vector.broadcast %54 : vector<1x256xi1> to vector<8x256xi1>
      %56 = vector.broadcast %cst_24 : f32 to vector<8x256xf32>
      %57 = arith.select %55, %53, %56 : vector<8x256xi1>, vector<8x256xf32>
      %58 = vector.shape_cast %57 : vector<8x256xf32> to vector<1x8x256xf32>
      %cst_25 = arith.constant dense<0.000000e+00> : vector<1xf32>
      %59 = vector.multi_reduction <add>, %58, %cst_25 [1, 2] : vector<1x8x256xf32> to vector<1xf32>
      %60 = vector.shape_cast %59 : vector<1xf32> to vector<1x1x1xf32>
      %61 = vector.extract %60[0, 0, 0] : f32 from vector<1x1x1xf32>
      %cst_26 = arith.constant 0.00416666688 : f32
      %62 = arith.mulf %52, %cst_26 : f32
      %cst_27 = arith.constant 0.00416666688 : f32
      %63 = arith.mulf %61, %cst_27 : f32
      %64 = arith.addf %62, %63 : f32
      %cst_28 = arith.constant 1.000000e+00 : f32
      %65 = arith.mulf %cst_28, %64 : f32
      %66 = vector.broadcast %65 : f32 to vector<1x128xf32>
      %c0_29 = arith.constant 0 : index
      %c0_30 = arith.constant 0 : index
      %c0_31 = arith.constant 0 : index
      %67 = vector.load %arg3[%c0_29, %c0_30, %c0_31] : memref<1x1x128xf32, #tpu.memory_space<vmem>>, vector<1x1x128xf32>
      %68 = vector.shape_cast %67 : vector<1x1x128xf32> to vector<1x128xf32>
      %69 = vector.shape_cast %66 : vector<1x128xf32> to vector<1x1x128xf32>
      tpu.vector_store %arg3[%c0_29, %c0_30, %c0_31], %69 {strides = array<i32>} : memref<1x1x128xf32, #tpu.memory_space<vmem>>, vector<1x1x128xf32>,
    } else {
    }
    return
  }
  func.func @transform_0(%arg0: i32, %arg1: i32) -> (i32, i32) {
    %c1_i32 = arith.constant 1 : i32
    %0 = arith.muli %arg0, %c1_i32 : i32
    %1 = arith.addi %0, %arg1 : i32
    %c0_i32 = arith.constant 0 : i32
    %2 = arith.minsi %1, %c0_i32 : i32
    %c0_i32_0 = arith.constant 0 : i32
    %c0_i32_1 = arith.constant 0 : i32
    return %2, %c0_i32_0 : i32, i32
  }
  func.func @transform_1(%arg0: i32, %arg1: i32) -> (i32, i32, i32) {
    %c0_i32 = arith.constant 0 : i32
    %c0_i32_0 = arith.constant 0 : i32
    %c0_i32_1 = arith.constant 0 : i32
    return %arg0, %c0_i32, %c0_i32_0 : i32, i32, i32
  }
}

</mosaic_0001>

<llo_original>
// kernel: tpu_custom_call.1
$region0: #{tpu_custom_call.1}
  #allocation0 [shape = 'u32[]', space=smem, size = 0x4, offset = 0x4, fixed_abs, tag = 'smem constant byte address 0x4 - core index']
  #allocation1 [shape = 'u32[144,128]{1,0:T(1,128)}', space=vmem, size = 0x12000, scoped, tag = 'internal scratch']
  #allocation2 [shape = 'f32[8,256]{1,0:T(8,128)}', space=vmem, size = 0x2000, scoped, tag = 'scratch operand']
  #allocation3 [shape = 'f32[8,256]{1,0:T(8,128)}', space=vmem, size = 0x2000, scoped, tag = 'scratch operand']
  %s0 = inlined_call_operand.hbm [shape: f32[8,256], index: 0, kind: input, shape index: {}]
  %s1 = inlined_call_operand.hbm [shape: f32[1,1,128], index: 1, kind: output, shape index: {}]
  %s2 = sld [smem:[#allocation0]]
  $region26: #{tpu_custom_call.1} parent=0
    _
  %s4 = ssub.s32 1, %s2
  %s5 = scalar_select 0, %s4, %s2
  $region1: #{tpu_custom_call.1} parent=0
    #allocation4 [shape = 'u8[8192]{0}', space=vmem, size = 0x2000, scoped, tag = 'input window, operand 0, single buffered']
    #allocation5 [shape = 's32[1]{0}', space=sflag, size = 0x4, scoped, tag = 'scoped memory for tpu_custom_call.1']
    #allocation6 [shape = 's32[1]{0}', space=sflag, size = 0x4, scoped, tag = 'scoped memory for tpu_custom_call.1']
    #allocation7 [shape = 'u8[512]{0}', space=vmem, size = 0x400, scoped, tag = 'output window, operand 0, single buffered']
    %6 = vsyncpa [#allocation5], 0
    %7 = vsyncpa [#allocation6], 0
    // Predicated region
    $region2: #{tpu_custom_call.1} parent=1 // pred_check
      _
    $region3: #{tpu_custom_call.1} parent=1 // pred_check_branch
      %9 = sbr.rel (0) target = $region5
    $region4: #{tpu_custom_call.1} parent=1 // pred_region
      %s10 = sadd.s32 0, 0
      %p11 = scmp.lt.s32.totalorder %s10, 0
      %s12 = scalar_select %p11, %s10, 0
      %s14 = ssub.s32 256, 256
      %15 = vsyncadd [#allocation5], %s14
      %s16 = smul.addr %s12, 2
      %s17 = smul.addr %s16, 128
      %s18 = scalar_lea.hbm %s0, %s17
      %s20 = sshll.u32 [#allocation4], 4
      %s21 = int_to_ptr.vmem [resolvable:$true] %s20
      %23 = dma.hbm_to_vmem [thread:$0]  %s18, 256, %s21, [#allocation5]
    $region5: #{tpu_custom_call.1} parent=1 // pred_fallthru
      _
    // Predicated region
    $region6: #{tpu_custom_call.1} parent=1 // pred_check
      _
    $region7: #{tpu_custom_call.1} parent=1 // pred_check_branch
      %25 = sbr.rel (0) target = $region9
    $region8: #{tpu_custom_call.1} parent=1 // pred_region
      %26 = dma.done [#allocation5], 256
    $region9: #{tpu_custom_call.1} parent=1 // pred_fallthru
      _
    %s27 = sadd.s32 0, 0
    %p28 = scmp.lt.s32.totalorder %s27, 0
    %s29 = scalar_select %p28, %s27, 0
    %p30 = scmp.eq.s32.totalorder 0, 0
    // Predicated region
    $region10: #{tpu_custom_call.1} parent=1 // pred_check
      %p31 = pneg %p30
    $region11: #{tpu_custom_call.1} parent=1 // pred_check_branch
      %33 = sbr.rel (%p31) target = $region13
    $region12: #{tpu_custom_call.1} parent=1 // pred_region
      %34 = vst [vmem:[#allocation2] sm:$0xff] 0.0
      %35 = vst [vmem:[#allocation2 + $0x8] sm:$0xff] 0.0
      %36 = vst [vmem:[#allocation3] sm:$0xff] 0.0
      %37 = vst [vmem:[#allocation3 + $0x8] sm:$0xff] 0.0
    $region13: #{tpu_custom_call.1} parent=1 // pred_fallthru
      _
    %v38 = vld [vmem:[#allocation4] sm:$0xff]
    %v39 = vld [vmem:[#allocation4 + $0x8] sm:$0xff]
    %40 = vrot.lane.b32.xlu0 %v38, 112
    %v41 = vpop.permute.xlu0 %40
    %42 = vrot.lane.b32.xlu0 %v39, 112
    %v43 = vpop.permute.xlu0 %42
    %v44 = vlaneseq
    %v45 = vand.u32 %v44, 127
    %vm46 = vcmp.lt.s32.totalorder %v45, 112
    %v47 = vsel %vm46, %v41, %v43
    %v48 = vsel %vm46, %v43, %v41
    %v49 = vsub.f32 %v47, %v38
    %v50 = vsub.f32 %v48, %v39
    %51 = vrot.lane.b32.xlu0 %v38, 127
    %v52 = vpop.permute.xlu0 %51
    %53 = vrot.lane.b32.xlu0 %v39, 127
    %v54 = vpop.permute.xlu0 %53
    %vm55 = vcmp.lt.s32.totalorder %v45, 127
    %v56 = vsel %vm55, %v52, %v54
    %v57 = vsel %vm55, %v54, %v52
    %v58 = vsub.f32 %v56, %v38
    %v59 = vsub.f32 %v57, %v39
    %v60 = vand.u32 2147483647, %v49
    %v61 = vand.u32 2147483647, %v50
    %v62 = vadd.f32 %v60, 0.0
    %v63 = vadd.f32 %v61, 0.0
    %v64 = vand.u32 2147483647, %v58
    %v65 = vand.u32 2147483647, %v59
    %v66 = vadd.f32 %v64, 0.0
    %v67 = vadd.f32 %v65, 0.0
    %v68 = vld [vmem:[#allocation2] sm:$0xff]
    %v69 = vld [vmem:[#allocation2 + $0x8] sm:$0xff]
    %v70 = vadd.f32 %v68, %v62
    %v71 = vadd.f32 %v69, %v63
    %72 = vst [vmem:[#allocation2] sm:$0xff] %v70
    %73 = vst [vmem:[#allocation2 + $0x8] sm:$0xff] %v71
    %v74 = vld [vmem:[#allocation3] sm:$0xff]
    %v75 = vld [vmem:[#allocation3 + $0x8] sm:$0xff]
    %v76 = vadd.f32 %v74, %v66
    %v77 = vadd.f32 %v75, %v67
    %78 = vst [vmem:[#allocation3] sm:$0xff] %v76
    %79 = vst [vmem:[#allocation3 + $0x8] sm:$0xff] %v77
    // Predicated region
    $region14: #{tpu_custom_call.1} parent=1 // pred_check
      %p80 = pneg %p30
    $region15: #{tpu_custom_call.1} parent=1 // pred_check_branch
      %82 = sbr.rel (%p80) target = $region17
    $region16: #{tpu_custom_call.1} parent=1 // pred_region
      %v83 = vadd.s32 %v45, 128
      %vm84 = vcmp.lt.s32.totalorder %v45, 240
      %vm85 = vcmp.lt.s32.totalorder %v83, 240
      %vm86 = vcmp.lt.s32.totalorder %v45, 0
      %v87 = vsub.s32 0, %v45
      %v88 = vsel %vm86, %v87, %v45
      %v89 = vshrl.u32 %v88, 4
      %v90 = vand.u32 %v88, 15
      %v91 = vsub.s32 0, %v90
      %v92 = vsel %vm86, %v91, %v90
      %vm93 = vcmp.lt.s32.totalorder %v83, 0
      %v94 = vsub.s32 0, %v83
      %v95 = vsel %vm93, %v94, %v83
      %v96 = vshrl.u32 %v95, 4
      %v97 = vand.u32 %v95, 15
      %v98 = vsub.s32 0, %v97
      %v99 = vsel %vm93, %v98, %v97
      %vm100 = vcmp.ne.s32.totalorder %v92, 0
      %vm101 = vcmp.ne.s32.totalorder %v99, 0
      %vm102 = vcmp.lt.s32.totalorder %v92, 0
      %vm103 = vcmp.lt.s32.totalorder %v99, 0
      %vm104 = vmand %vm102, %vm100
      %vm105 = vmand %vm103, %vm101
      %v106 = vadd.s32 %v92, 16
      %v107 = vadd.s32 %v99, 16
      %v108 = vsel %vm104, %v106, %v92
      %v109 = vsel %vm105, %v107, %v99
      %vm110 = vcmp.ne.s32.totalorder %v108, 15
      %vm111 = vcmp.ne.s32.totalorder %v109, 15
      %v112 = vld [vmem:[#allocation2] sm:$0xff]
      %v113 = vld [vmem:[#allocation2 + $0x8] sm:$0xff]
      %v114 = vsel %vm84, 1, 0
      %v115 = vsel %vm85, 1, 0
      %vm116 = vcmp.eq.s32.totalorder %v114, 1
      %vm117 = vcmp.eq.s32.totalorder %v115, 1
      %v118 = vsel %vm116, %v112, 0.0
      %v119 = vsel %vm117, %v113, 0.0
      %v120 = vadd.f32 %v118, %v119
      %121 = vadd.xlane.f32.xlu0 %v120
      %v122 = vpop.xlane.xlu0 %121
      %v123 = vrot.slane %v122, 4
      %v124 = vadd.f32 %v122, %v123
      %v125 = vrot.slane %v124, 2
      %v126 = vadd.f32 %v124, %v125
      %v127 = vrot.slane %v126, 1
      %v128 = vadd.f32 %v126, %v127
      %s129 = vtos %v128
      %v130 = vld [vmem:[#allocation3] sm:$0xff]
      %v131 = vld [vmem:[#allocation3 + $0x8] sm:$0xff]
      %v132 = vsel %vm110, 1, 0
      %v133 = vsel %vm111, 1, 0
      %vm134 = vcmp.eq.s32.totalorder %v132, 1
      %vm135 = vcmp.eq.s32.totalorder %v133, 1
      %v136 = vsel %vm134, %v130, 0.0
      %v137 = vsel %vm135, %v131, 0.0
      %v138 = vadd.f32 %v136, %v137
      %139 = vadd.xlane.f32.xlu0 %v138
      %v140 = vpop.xlane.xlu0 %139
      %v141 = vrot.slane %v140, 4
      %v142 = vadd.f32 %v140, %v141
      %v143 = vrot.slane %v142, 2
      %v144 = vadd.f32 %v142, %v143
      %v145 = vrot.slane %v144, 1
      %v146 = vadd.f32 %v144, %v145
      %s147 = vtos %v146
      %s148 = smul.f32 %s129, 0.004166667
      %s149 = smul.f32 %s147, 0.004166667
      %s150 = sadd.f32 %s148, %s149
      %v151 = vstv %s150
      %152 = vst [vmem:[#allocation7] sm:$0x1] %v151
    $region17: #{tpu_custom_call.1} parent=1 // pred_fallthru
      _
    // Predicated region
    $region18: #{tpu_custom_call.1} parent=1 // pred_check
      _
    $region19: #{tpu_custom_call.1} parent=1 // pred_check_branch
      %154 = sbr.rel (0) target = $region21
    $region20: #{tpu_custom_call.1} parent=1 // pred_region
      %s156 = ssub.s32 16, 16
      %157 = vsyncadd [#allocation6], %s156
      %s159 = sshll.u32 [#allocation7], 4
      %s160 = int_to_ptr.vmem [resolvable:$true] %s159
      %162 = dma.vmem_to_hbm [thread:$0]  %s160, 16, %s1, [#allocation6]
    $region21: #{tpu_custom_call.1} parent=1 // pred_fallthru
      _
    // Predicated region
    $region22: #{tpu_custom_call.1} parent=1 // pred_check
      _
    $region23: #{tpu_custom_call.1} parent=1 // pred_check_branch
      %164 = sbr.rel (0) target = $region25
    $region24: #{tpu_custom_call.1} parent=1 // pred_region
      %165 = dma.done [#allocation6], 16
    $region25: #{tpu_custom_call.1} parent=1 // pred_fallthru
      _
    %166 = vsyncpa [#allocation5], 1
    %167 = vsyncpa [#allocation6], 1

</llo_original>
